<compile_context>
chip_gen: v7x
topology: tpu7x:2x2x1
jax: 0.10.0
libtpu: 0.0.40
codegen_flags: <defaults>
</compile_context>

<pallas_src>
import functools

import jax
import jax.numpy as jnp
from jax import lax
from jax.experimental import pallas as pl
from jax.experimental.pallas import tpu as pltpu


# 48 MiB scoped VMEM: large enough for every tile below, valid on v7x (64 MiB physical).
VMEM_LIMIT = 48 * 1024 * 1024


# ------------------------------------------------------------------ utilities
def _round_up(n, m):
    return (n + m - 1) // m * m


class KeyGen:
    def __init__(self, seed=0):
        self.key = jax.random.PRNGKey(seed)

    def __call__(self):
        self.key, sub = jax.random.split(self.key)
        return sub


# ------------------------------------------------------------------ fused matmul kernel
def _matmul_kernel(a_ref, w_ref, b_ref, *rest, relu, has_res):
    if has_res:
        r_ref, o_ref, acc_ref = rest
    else:
        o_ref, acc_ref = rest
    k = pl.program_id(2)

    @pl.when(k == 0)
    def _():
        acc_ref[...] = jnp.zeros_like(acc_ref)

    # bf16 x bf16 -> f32 accumulation on the MXU.
    acc_ref[...] += jnp.dot(a_ref[...], w_ref[...],
                            preferred_element_type=jnp.float32)

    @pl.when(k == pl.num_programs(2) - 1)
    def _():
        out = acc_ref[...] + b_ref[...]          # f32 epilogue
        if has_res:
            out = out + r_ref[...].astype(jnp.float32)
        if relu:
            out = jnp.maximum(out, 0.0)
        o_ref[...] = out.astype(o_ref.dtype)


def _pick_tm(m):
    m8 = _round_up(max(m, 1), 8)
    if m8 <= 512:
        return m8
    if m8 <= 4096:
        return 256
    return 512


def _pick_tn(n):
    if n > 512 and n % 512 == 0:
        return 512
    return n


def _pick_tk(k):
    if k > 1024:
        for cand in (512, 384, 256, 128):
            if k % cand == 0:
                return cand
    return k


def matmul_fused(a, w, bias, residual=None, *, relu=False, out_dtype=jnp.bfloat16):
    """out = relu((a @ w) + bias [+ residual]).  a:(M,K), w:(K,N) bf16 (BN scale folded),
    bias:(1,N) f32, residual optional (M,N)."""
    M, K = a.shape
    K2, N = w.shape
    assert K == K2
    TM = _pick_tm(M)
    TN = _pick_tn(N)
    TK = _pick_tk(K)
    Mp = _round_up(M, TM)

    a = a.astype(jnp.bfloat16)
    if Mp != M:
        a = jnp.pad(a, ((0, Mp - M), (0, 0)))
        if residual is not None:
            residual = jnp.pad(residual, ((0, Mp - M), (0, 0)))

    grid = (Mp // TM, N // TN, K // TK)
    in_specs = [
        pl.BlockSpec((TM, TK), lambda i, j, k: (i, k)),
        pl.BlockSpec((TK, TN), lambda i, j, k: (k, j)),
        pl.BlockSpec((1, TN), lambda i, j, k: (0, j)),
    ]
    inputs = [a, w.astype(jnp.bfloat16), bias]
    has_res = residual is not None
    if has_res:
        in_specs.append(pl.BlockSpec((TM, TN), lambda i, j, k: (i, j)))
        inputs.append(residual.astype(jnp.bfloat16))

    out = pl.pallas_call(
        functools.partial(_matmul_kernel, relu=relu, has_res=has_res),
        out_shape=jax.ShapeDtypeStruct((Mp, N), out_dtype),
        grid=grid,
        in_specs=in_specs,
        out_specs=pl.BlockSpec((TM, TN), lambda i, j, k: (i, j)),
        scratch_shapes=[pltpu.VMEM((TM, TN), jnp.float32)],
        compiler_params=pltpu.CompilerParams(
            dimension_semantics=("parallel", "parallel", "arbitrary"),
            vmem_limit_bytes=VMEM_LIMIT),
    )(*inputs)
    if Mp != M:
        out = out[:M]
    return out


# ------------------------------------------------------------------ direct tap-conv kernel
def _tap_conv_kernel(x_ref, w_ref, b_ref, o_ref, *, offsets, out_rows, relu):
    """x_ref:(1,L,Cin), w_ref:(n_taps,Cin,Cout), b_ref:(1,Cout), o_ref:(1,out_rows,Cout).
    out[r] = relu(bias + sum_t x[r + offsets[t]] @ w[t])  -- conv without im2col."""
    cout = w_ref.shape[-1]
    acc = jnp.zeros((out_rows, cout), jnp.float32)
    for t, off in enumerate(offsets):
        acc = acc + jnp.dot(x_ref[0, off:off + out_rows, :], w_ref[t],
                            preferred_element_type=jnp.float32)
    out = acc + b_ref[...]
    if relu:
        out = jnp.maximum(out, 0.0)
    o_ref[0] = out.astype(o_ref.dtype)


def _tap_conv_call(x_flat, w_taps, bias, *, offsets, out_rows, relu):
    G, L, cin = x_flat.shape
    n_taps, _, cout = w_taps.shape
    return pl.pallas_call(
        functools.partial(_tap_conv_kernel, offsets=offsets,
                          out_rows=out_rows, relu=relu),
        out_shape=jax.ShapeDtypeStruct((G, out_rows, cout), jnp.bfloat16),
        grid=(G,),
        in_specs=[
            pl.BlockSpec((1, L, cin), lambda i: (i, 0, 0)),
            pl.BlockSpec((n_taps, cin, cout), lambda i: (0, 0, 0)),
            pl.BlockSpec((1, cout), lambda i: (0, 0)),
        ],
        out_specs=pl.BlockSpec((1, out_rows, cout), lambda i: (i, 0, 0)),
        compiler_params=pltpu.CompilerParams(
            dimension_semantics=("parallel",),
            vmem_limit_bytes=VMEM_LIMIT),
    )(x_flat, w_taps, bias)


@functools.partial(jax.jit, static_argnames=("relu",))
def conv_spatial3x3(x, w_taps, bias, *, relu=True):
    """1x3x3 conv, stride 1, pad (0,1,1), no im2col.  x:(B,T,H,W,Cin), w_taps:(9,Cin,Cout)."""
    B, T, H, W, cin = x.shape
    cout = w_taps.shape[-1]
    Wp = W + 2
    # pad H by (1, 2): the extra bottom row is only read by the discarded "garbage" columns.
    xp = jnp.pad(x, ((0, 0), (0, 0), (1, 2), (1, 1), (0, 0)))
    xf = xp.reshape(B * T, (H + 3) * Wp, cin)
    offsets = tuple(dh * Wp + dw for dh in range(3) for dw in range(3))
    out = _tap_conv_call(xf, w_taps, bias, offsets=offsets,
                         out_rows=H * Wp, relu=relu)
    # rows are indexed h*Wp + w; only w < W is a valid output column.
    return out.reshape(B, T, H, Wp, cout)[:, :, :, :W, :]


@functools.partial(jax.jit, static_argnames=("relu",))
def conv_temporal3(x, w_taps, bias, *, relu=True):
    """3x1x1 conv, stride 1, pad (1,0,0), no im2col.  x:(B,T,H,W,Cin), w_taps:(3,Cin,Cout)."""
    B, T, H, W, cin = x.shape
    cout = w_taps.shape[-1]
    S = H * W
    xp = jnp.pad(x, ((0, 0), (1, 1), (0, 0), (0, 0), (0, 0)))
    xf = xp.reshape(B, (T + 2) * S, cin)
    offsets = tuple(dt * S for dt in range(3))
    out = _tap_conv_call(xf, w_taps, bias, offsets=offsets, out_rows=T * S, relu=relu)
    return out.reshape(B, T, H, W, cout)


# ------------------------------------------------------------------ im2col + matmul conv
def _im2col_3d(x, ksize, stride, padding):
    B, T, H, W, C = x.shape
    kt, kh, kw = ksize
    st, sh, sw = stride
    pt, ph, pw = padding
    xp = jnp.pad(x, ((0, 0), (pt, pt), (ph, ph), (pw, pw), (0, 0)))
    To = (T + 2 * pt - kt) // st + 1
    Ho = (H + 2 * ph - kh) // sh + 1
    Wo = (W + 2 * pw - kw) // sw + 1
    patches = []
    for dt in range(kt):
        for dh in range(kh):
            for dw in range(kw):
                p = lax.slice(
                    xp, (0, dt, dh, dw, 0),
                    (B, dt + (To - 1) * st + 1, dh + (Ho - 1) * sh + 1,
                     dw + (Wo - 1) * sw + 1, C),
                    (1, st, sh, sw, 1))
                patches.append(p)
    cols = patches[0] if len(patches) == 1 else jnp.concatenate(patches, axis=-1)
    return cols.reshape(B * To * Ho * Wo, kt * kh * kw * C), (B, To, Ho, Wo)


@functools.partial(jax.jit, static_argnames=("ksize", "stride", "padding", "relu"))
def conv3d_matmul(x, w_kn, bias, residual=None, *, ksize, stride, padding, relu):
    """General conv3d (+ folded BN + optional fused residual-add + ReLU) via im2col."""
    cols, (B, To, Ho, Wo) = _im2col_3d(x, ksize, stride, padding)
    res = None if residual is None else residual.reshape(-1, residual.shape[-1])
    out = matmul_fused(cols, w_kn, bias, res, relu=relu)
    return out.reshape(B, To, Ho, Wo, w_kn.shape[-1])


# ------------------------------------------------------------------ max pool kernel
def _max_reduce_kernel(x_ref, o_ref):
    o_ref[...] = jnp.max(x_ref[...], axis=0)


@jax.jit
def maxpool3d_1x3x3_s2(x):
    """Max pool kernel (1,3,3), stride (1,2,2), pad (0,1,1); single fused reduction."""
    B, T, H, W, C = x.shape
    Ho = (H + 2 - 3) // 2 + 1
    Wo = (W + 2 - 3) // 2 + 1
    neg = float(jnp.finfo(x.dtype).min)
    xp = jnp.pad(x, ((0, 0), (0, 0), (1, 1), (1, 1), (0, 0)), constant_values=neg)
    views = []
    for dh in range(3):
        for dw in range(3):
            views.append(lax.slice(
                xp, (0, 0, dh, dw, 0),
                (B, T, dh + (Ho - 1) * 2 + 1, dw + (Wo - 1) * 2 + 1, C),
                (1, 1, 2, 2, 1)))
    M = B * T * Ho * Wo
    stk = jnp.stack(views, axis=0).reshape(9, M, C)
    TR = min(_round_up(M, 8), 1024)
    Mp = _round_up(M, TR)
    if Mp != M:
        stk = jnp.pad(stk, ((0, 0), (0, Mp - M), (0, 0)), constant_values=neg)
    out = pl.pallas_call(
        _max_reduce_kernel,
        out_shape=jax.ShapeDtypeStruct((Mp, C), x.dtype),
        grid=(Mp // TR,),
        in_specs=[pl.BlockSpec((9, TR, C), lambda i: (0, i, 0))],
        out_specs=pl.BlockSpec((TR, C), lambda i: (i, 0)),
        compiler_params=pltpu.CompilerParams(
            dimension_semantics=("parallel",),
            vmem_limit_bytes=VMEM_LIMIT),
    )(stk)
    return out[:M].reshape(B, T, Ho, Wo, C)


# ------------------------------------------------------------------ video/attn fuse kernel
def _fuse_kernel(v_ref, a_ref, o_ref, *, op):
    v = v_ref[...]
    a = a_ref[...]                       # (B,1,TS) broadcasts against (B,C,TS)
    r = v + a if op == "add" else v * a
    o_ref[...] = r.astype(o_ref.dtype)


@functools.partial(jax.jit, static_argnames=("op",))
def fuse_video_attn(video, attn_map, *, op):
    """video:(B,C,T,H,W), attn:(B,1,T,H,W) -> fused channels-last bf16 (B,T,H,W,C)."""
    B, C, T, H, W = video.shape
    S = T * H * W
    v = video.reshape(B, C, S).astype(jnp.float32)
    a = attn_map.reshape(B, 1, S).astype(jnp.float32)
    TS = 2048
    Sp = _round_up(S, 128)
    if Sp > TS:
        Sp = _round_up(S, TS)
    else:
        TS = Sp
    if Sp != S:
        v = jnp.pad(v, ((0, 0), (0, 0), (0, Sp - S)))
        a = jnp.pad(a, ((0, 0), (0, 0), (0, Sp - S)))
    out = pl.pallas_call(
        functools.partial(_fuse_kernel, op=op),
        out_shape=jax.ShapeDtypeStruct((B, C, Sp), jnp.bfloat16),
        grid=(Sp // TS,),
        in_specs=[
            pl.BlockSpec((B, C, TS), lambda i: (0, 0, i)),
            pl.BlockSpec((B, 1, TS), lambda i: (0, 0, i)),
        ],
        out_specs=pl.BlockSpec((B, C, TS), lambda i: (0, 0, i)),
        compiler_params=pltpu.CompilerParams(
            dimension_semantics=("parallel",),
            vmem_limit_bytes=VMEM_LIMIT),
    )(v, a)
    x = out[:, :, :S].reshape(B, C, T, H, W)
    return jnp.transpose(x, (0, 2, 3, 4, 1))


# ------------------------------------------------------------------ head kernel
def _head_kernel(x_ref, w_ref, b_ref, o_ref):
    pooled = jnp.mean(x_ref[...].astype(jnp.float32), axis=1)     # (Bp, C)
    o_ref[...] = jnp.dot(pooled, w_ref[...],
                         preferred_element_type=jnp.float32) + b_ref[...]


@jax.jit
def head_forward(x, w, b):
    """x:(B,S,C) bf16 -> global avg pool over S -> @ w(C,Np) + b(1,Np) -> (B,Np) f32."""
    B, S, C = x.shape
    Np = w.shape[1]
    Bp = _round_up(B, 8)
    if Bp != B:
        x = jnp.pad(x, ((0, Bp - B), (0, 0), (0, 0)))
    out = pl.pallas_call(
        _head_kernel,
        out_shape=jax.ShapeDtypeStruct((Bp, Np), jnp.float32),
        grid=(1,),
        in_specs=[
            pl.BlockSpec((Bp, S, C), lambda i: (0, 0, 0)),
            pl.BlockSpec((C, Np), lambda i: (0, 0)),
            pl.BlockSpec((1, Np), lambda i: (0, 0)),
        ],
        out_specs=pl.BlockSpec((Bp, Np), lambda i: (0, 0)),
        compiler_params=pltpu.CompilerParams(vmem_limit_bytes=VMEM_LIMIT),
    )(x, w, b)
    return out[:B]


# ------------------------------------------------------------------ parameters (deterministic init)
STAGES = (
    dict(depth=3, dim_inner=64,  dim_out=256,  spatial_stride=1, a_temporal=False),
    dict(depth=4, dim_inner=128, dim_out=512,  spatial_stride=2, a_temporal=False),
    dict(depth=6, dim_inner=256, dim_out=1024, spatial_stride=2, a_temporal=True),
    dict(depth=3, dim_inner=512, dim_out=2048, spatial_stride=2, a_temporal=True),
)


def _conv_init(kg, shape):
    fan_in = shape[0] * shape[1] * shape[2] * shape[3]
    std = (2.0 / fan_in) ** 0.5
    return std * jax.random.normal(kg(), shape, jnp.float32)


def _bn_affine(kg, c, eps=1e-5):
    gamma = 1.0 + 0.1 * jax.random.normal(kg(), (c,), jnp.float32)
    beta = 0.1 * jax.random.normal(kg(), (c,), jnp.float32)
    mean = jnp.zeros((c,), jnp.float32)
    var = jnp.ones((c,), jnp.float32)
    scale = gamma / jnp.sqrt(var + eps)
    bias = beta - mean * scale
    return scale, bias


def _prep_conv_bn(kg, kshape, *, layout):
    """Init conv + BN, fold BN scale into the weight (inference), pre-reshape + cast once.
    layout='kn'  -> (kt*kh*kw*Cin, Cout) bf16 (im2col order)
    layout='taps'-> (kt*kh*kw, Cin, Cout) bf16 (direct tap-conv kernel)."""
    kt, kh, kw, cin, cout = kshape
    w = _conv_init(kg, kshape)
    scale, bias = _bn_affine(kg, cout)
    w = w * scale                                    # fold BN scale into weight columns
    if layout == "kn":
        wp = w.reshape(kt * kh * kw * cin, cout)
    else:
        wp = w.reshape(kt * kh * kw, cin, cout)
    return wp.astype(jnp.bfloat16), bias.reshape(1, cout)


def _init_block(kg, dim_in, dim_inner, dim_out, *, a_temporal, b_stride, use_shortcut):
    p = {}
    kt = 3 if a_temporal else 1
    p["a_w"], p["a_b"] = _prep_conv_bn(kg, (kt, 1, 1, dim_in, dim_inner),
                                       layout="taps" if a_temporal else "kn")
    p["b_w"], p["b_b"] = _prep_conv_bn(kg, (1, 3, 3, dim_inner, dim_inner),
                                       layout="kn" if b_stride > 1 else "taps")
    p["c_w"], p["c_b"] = _prep_conv_bn(kg, (1, 1, 1, dim_inner, dim_out), layout="kn")
    if use_shortcut:
        p["sc_w"], p["sc_b"] = _prep_conv_bn(kg, (1, 1, 1, dim_in, dim_out), layout="kn")
    return p


def init_params(class_num=3, fuse_method="add", seed=0):
    kg = KeyGen(seed)
    in_ch = 4 if fuse_method == "concat" else 3
    params = {}
    # stem: Conv3d(in_ch, 64, (1,7,7), stride (1,2,2), pad (0,3,3), bias=False) + BN + ReLU
    params["stem_w"], params["stem_b"] = _prep_conv_bn(kg, (1, 7, 7, in_ch, 64), layout="kn")
    stages = []
    dim_in = 64
    for cfg in STAGES:
        blocks = []
        for bi in range(cfg["depth"]):
            block_in = dim_in if bi == 0 else cfg["dim_out"]
            stride = cfg["spatial_stride"] if bi == 0 else 1
            blocks.append(_init_block(kg, block_in, cfg["dim_inner"], cfg["dim_out"],
                                      a_temporal=cfg["a_temporal"],
                                      b_stride=stride,
                                      use_shortcut=(bi == 0)))
        stages.append(blocks)
        dim_in = cfg["dim_out"]
    params["stages"] = stages
    # head: Linear(2048, class_num), pre-padded to a 128-lane output once at init.
    Np = _round_up(class_num, 128)
    pw = (1.0 / 2048 ** 0.5) * jax.random.normal(kg(), (2048, class_num), jnp.float32)
    params["proj_w"] = jnp.pad(pw, ((0, 0), (0, Np - class_num)))
    params["proj_b"] = jnp.zeros((1, Np), jnp.float32)
    params["class_num"] = class_num
    return params


# ------------------------------------------------------------------ model forward
_DIRECT_OK = {"spatial": True, "temporal": True}   # safety fallback to im2col if lowering fails


def _conv_a(x, p, a_temporal):
    if a_temporal:
        if _DIRECT_OK["temporal"]:
            try:
                return conv_temporal3(x, p["a_w"], p["a_b"], relu=True)
            except Exception:
                _DIRECT_OK["temporal"] = False
        w_kn = p["a_w"].reshape(-1, p["a_w"].shape[-1])
        return conv3d_matmul(x, w_kn, p["a_b"],
                             ksize=(3, 1, 1), stride=(1, 1, 1), padding=(1, 0, 0), relu=True)
    return conv3d_matmul(x, p["a_w"], p["a_b"],
                         ksize=(1, 1, 1), stride=(1, 1, 1), padding=(0, 0, 0), relu=True)


def _conv_b(x, p, stride):
    if stride == 1:
        if _DIRECT_OK["spatial"]:
            try:
                return conv_spatial3x3(x, p["b_w"], p["b_b"], relu=True)
            except Exception:
                _DIRECT_OK["spatial"] = False
        w_kn = p["b_w"].reshape(-1, p["b_w"].shape[-1])
        return conv3d_matmul(x, w_kn, p["b_b"],
                             ksize=(1, 3, 3), stride=(1, 1, 1), padding=(0, 1, 1), relu=True)
    return conv3d_matmul(x, p["b_w"], p["b_b"],
                         ksize=(1, 3, 3), stride=(1, stride, stride),
                         padding=(0, 1, 1), relu=True)


def _bottleneck_block(x, p, stride, a_temporal):
    if "sc_w" in p:
        sc = conv3d_matmul(x, p["sc_w"], p["sc_b"],
                           ksize=(1, 1, 1), stride=(1, stride, stride),
                           padding=(0, 0, 0), relu=False)
    else:
        sc = x
    h = _conv_a(x, p, a_temporal)
    h = _conv_b(h, p, stride)
    # 1x1x1 c-conv with the residual add + ReLU fused into the matmul epilogue.
    return conv3d_matmul(h, p["c_w"], p["c_b"], sc,
                         ksize=(1, 1, 1), stride=(1, 1, 1), padding=(0, 0, 0), relu=True)


def res3dcnn_forward(params, video, attn_map, fuse_method="add"):
    """video: (B, C, T, H, W), attn_map: (B, 1, T, H, W) -> logits (B, class_num)."""
    assert video.shape[0] == attn_map.shape[0], "the batch size is not equal"
    assert video.shape[2] == attn_map.shape[2], "the time size is not equal"
    assert video.shape[3] == attn_map.shape[3], "the height size is not equal"
    assert video.shape[4] == attn_map.shape[4], "the width size is not equal"

    if fuse_method in ("add", "mul"):
        x = fuse_video_attn(video, attn_map, op=fuse_method)        # channels-last bf16
    elif fuse_method == "concat":
        x = jnp.concatenate([video, attn_map], axis=1)
        x = jnp.transpose(x, (0, 2, 3, 4, 1)).astype(jnp.bfloat16)
    elif fuse_method == "none":
        x = jnp.transpose(video, (0, 2, 3, 4, 1)).astype(jnp.bfloat16)
    else:
        raise KeyError(f"the fuse method {fuse_method} is not in the model zoo")

    # stem conv + BN + ReLU, then max pool
    x = conv3d_matmul(x, params["stem_w"], params["stem_b"],
                      ksize=(1, 7, 7), stride=(1, 2, 2), padding=(0, 3, 3), relu=True)
    x = maxpool3d_1x3x3_s2(x)

    # residual stages (ResNet-50 slow pathway: depths 3,4,6,3)
    for blocks, cfg in zip(params["stages"], STAGES):
        for bi, bp in enumerate(blocks):
            stride = cfg["spatial_stride"] if bi == 0 else 1
            x = _bottleneck_block(x, bp, stride, cfg["a_temporal"])

    # head: global average pool over (T,H,W) + Linear(2048, class_num)
    B, T, H, W, C = x.shape
    logits = head_forward(x.reshape(B, T * H * W, C), params["proj_w"], params["proj_b"])
    return logits[:, :params["class_num"]]


# ------------------------------------------------------------------ main
if __name__ == "__main__":
    key = jax.random.PRNGKey(0)
    kv, ka = jax.random.split(key)

    B, C, T, H, W = 2, 3, 4, 32, 32
    video = jax.random.normal(kv, (B, C, T, H, W), jnp.float32)
    attn_map = jax.random.uniform(ka, (B, 1, T, H, W), jnp.float32)

    params = init_params(class_num=3, fuse_method="add", seed=0)
    logits = res3dcnn_forward(params, video, attn_map, fuse_method="add")
    logits = jax.block_until_ready(logits)

    assert logits.shape == (B, 3), logits.shape
    assert bool(jnp.isfinite(logits).all())
    print("KERNEL_OK")
</pallas_src>

<mosaic_0001>
module attributes {stable_mosaic.version = 11 : i64} {
  func.func @_fuse_kernel(%arg0: i32, %arg1: memref<2x3x2048xf32, #tpu.memory_space<vmem>>, %arg2: memref<2x1x2048xf32, #tpu.memory_space<vmem>>, %arg3: memref<2x3x2048xbf16, #tpu.memory_space<vmem>>) attributes {dimension_semantics = [#tpu.dimension_semantics<parallel>], iteration_bounds = array<i64: 2>, scalar_prefetch = 0 : i64, scratch_operands = 0 : i64, tpu.core_type = #tpu.core_type<tc>, window_params = [{transform_indices = @transform_0, window_bounds = array<i64: 2, 3, 2048>}, {transform_indices = @transform_1, window_bounds = array<i64: 2, 1, 2048>}, {transform_indices = @transform_2, window_bounds = array<i64: 2, 3, 2048>}]} {
    %c0 = arith.constant 0 : index
    %c0_0 = arith.constant 0 : index
    %c0_1 = arith.constant 0 : index
    %0 = vector.load %arg1[%c0, %c0_0, %c0_1] : memref<2x3x2048xf32, #tpu.memory_space<vmem>>, vector<2x3x2048xf32>
    %c0_2 = arith.constant 0 : index
    %c0_3 = arith.constant 0 : index
    %c0_4 = arith.constant 0 : index
    %1 = vector.load %arg2[%c0_2, %c0_3, %c0_4] : memref<2x1x2048xf32, #tpu.memory_space<vmem>>, vector<2x1x2048xf32>
    %2 = vector.broadcast %1 : vector<2x1x2048xf32> to vector<2x3x2048xf32>
    %3 = arith.addf %0, %2 : vector<2x3x2048xf32>
    %4 = arith.truncf %3 : vector<2x3x2048xf32> to vector<2x3x2048xbf16>
    %c0_5 = arith.constant 0 : index
    %c0_6 = arith.constant 0 : index
    %c0_7 = arith.constant 0 : index
    %5 = vector.load %arg3[%c0_5, %c0_6, %c0_7] : memref<2x3x2048xbf16, #tpu.memory_space<vmem>>, vector<2x3x2048xbf16>
    tpu.vector_store %arg3[%c0_5, %c0_6, %c0_7], %4 {strides = array<i32>} : memref<2x3x2048xbf16, #tpu.memory_space<vmem>>, vector<2x3x2048xbf16>,
    return
  }
  func.func @transform_0(%arg0: i32) -> (i32, i32, i32) {
    %c0_i32 = arith.constant 0 : i32
    %c0_i32_0 = arith.constant 0 : i32
    %c0_i32_1 = arith.constant 0 : i32
    return %c0_i32, %c0_i32_0, %arg0 : i32, i32, i32
  }
  func.func @transform_1(%arg0: i32) -> (i32, i32, i32) {
    %c0_i32 = arith.constant 0 : i32
    %c0_i32_0 = arith.constant 0 : i32
    %c0_i32_1 = arith.constant 0 : i32
    return %c0_i32, %c0_i32_0, %arg0 : i32, i32, i32
  }
  func.func @transform_2(%arg0: i32) -> (i32, i32, i32) {
    %c0_i32 = arith.constant 0 : i32
    %c0_i32_0 = arith.constant 0 : i32
    %c0_i32_1 = arith.constant 0 : i32
    return %c0_i32, %c0_i32_0, %arg0 : i32, i32, i32
  }
}

</mosaic_0001>

<llo_original>
// kernel: fuse_video_attn.1
$region0: #{fuse_video_attn.1}
  #allocation0 [shape = 'u32[]', space=smem, size = 0x4, offset = 0x4, fixed_abs, tag = 'smem constant byte address 0x4 - core index']
  #allocation1 [shape = 'u32[144,128]{1,0:T(1,128)}', space=vmem, size = 0x12000, scoped, tag = 'internal scratch']
  %s0 = inlined_call_operand.vmem [shape: f32[2,3,4096], index: 0, kind: input, shape index: {}]
  %s1 = inlined_call_operand.vmem [shape: f32[2,1,4096], index: 1, kind: input, shape index: {}]
  %s2 = inlined_call_operand.vmem [shape: bf16[2,3,4096], index: 2, kind: output, shape index: {}]
  %s3 = sld [smem:[#allocation0]]
  $region106: #{fuse_video_attn.1} parent=0
    _
  %s5 = ssub.s32 1, %s3
  %s6 = scalar_select 0, %s5, %s3
  $region1: #{fuse_video_attn.1} parent=0
    #allocation2 [shape = 'u8[131072]{0}', space=vmem, size = 0x20000, scoped, tag = 'input window, operand 0']
    #allocation3 [shape = 'u8[32768]{0}', space=vmem, size = 0x8000, scoped, tag = 'input window, operand 1']
    #allocation4 [shape = 'u8[65536]{0}', space=vmem, size = 0x10000, scoped, tag = 'output window, operand 0']
    loop: start=0, step=1, limit=4
    $region2: #{fuse_video_attn.1} parent=1 // loop_pre_header
      _
    $region3: #{fuse_video_attn.1} parent=1 // loop_header
      %s8 = sphi 0, %s12
      %p9 = scmp.ge.s32.totalorder %s8, 4
      %s18 = sphi 0, %s20
      %s21 = sphi 0, %s18
      %s22 = sphi 0, %s21
      %s38 = sphi 0, %s22
      %s44 = sphi 0, %s46
      %s47 = sphi 0, %s44
      %s48 = sphi 0, %s47
      %s64 = sphi 0, %s48
      %s70 = sphi 0, %s72
      %s73 = sphi 0, %s70
      %s74 = sphi 0, %s73
      %s90 = sphi 0, %s74
    $region4: #{fuse_video_attn.1} parent=1 // loop_header_branch
      %11 = sbr.rel (%p9) target = $region8
    $region5: #{fuse_video_attn.1} parent=1 // loop_body
      %s13 = ssub.s32 %s8, 1
      %s14 = ssub.s32 %s8, 2
      %s15 = sadd.s32 %s8, 1
      %s16 = ssub.s32 %s8, %s15
      %p17 = scmp.eq.s32.totalorder %s16, 0
      %s19 = sadd.s32 %s18, 1
      %s20 = scalar_select %p17, %s18, %s19
      %p23 = pneg %p17
      %p24 = scmp.eq.s32.totalorder %s8, 1
      %p25 = por %p23, %p24
      %p26 = scmp.ne.s32.totalorder %s18, %s21
      %p27 = scmp.eq.s32.totalorder %s8, 0
      %p28 = por %p26, %p27
      %p29 = scmp.ne.s32.totalorder %s18, %s21
      %p30 = scmp.eq.s32.totalorder %s13, 1
      %p31 = por %p29, %p30
      %p32 = scmp.ne.s32.totalorder %s21, %s22
      %p33 = scmp.eq.s32.totalorder %s13, 0
      %p34 = por %p32, %p33
      %p35 = scmp.ne.s32.totalorder %s21, %s22
      %p36 = scmp.eq.s32.totalorder %s14, 1
      %p37 = por %p35, %p36
      %p39 = scmp.ne.s32.totalorder %s22, %s38
      %p40 = scmp.eq.s32.totalorder %s14, 0
      %p41 = por %p39, %p40
      %s42 = ssub.s32 %s8, %s15
      %p43 = scmp.eq.s32.totalorder %s42, 0
      %s45 = sadd.s32 %s44, 1
      %s46 = scalar_select %p43, %s44, %s45
      %p49 = pneg %p43
      %p50 = scmp.eq.s32.totalorder %s8, 1
      %p51 = por %p49, %p50
      %p52 = scmp.ne.s32.totalorder %s44, %s47
      %p53 = scmp.eq.s32.totalorder %s8, 0
      %p54 = por %p52, %p53
      %p55 = scmp.ne.s32.totalorder %s44, %s47
      %p56 = scmp.eq.s32.totalorder %s13, 1
      %p57 = por %p55, %p56
      %p58 = scmp.ne.s32.totalorder %s47, %s48
      %p59 = scmp.eq.s32.totalorder %s13, 0
      %p60 = por %p58, %p59
      %p61 = scmp.ne.s32.totalorder %s47, %s48
      %p62 = scmp.eq.s32.totalorder %s14, 1
      %p63 = por %p61, %p62
      %p65 = scmp.ne.s32.totalorder %s48, %s64
      %p66 = scmp.eq.s32.totalorder %s14, 0
      %p67 = por %p65, %p66
      %s68 = ssub.s32 %s8, %s15
      %p69 = scmp.eq.s32.totalorder %s68, 0
      %s71 = sadd.s32 %s70, 1
      %s72 = scalar_select %p69, %s70, %s71
      %p75 = pneg %p69
      %p76 = scmp.eq.s32.totalorder %s8, 1
      %p77 = por %p75, %p76
      %p78 = scmp.ne.s32.totalorder %s70, %s73
      %p79 = scmp.eq.s32.totalorder %s8, 0
      %p80 = por %p78, %p79
      %p81 = scmp.ne.s32.totalorder %s70, %s73
      %p82 = scmp.eq.s32.totalorder %s13, 1
      %p83 = por %p81, %p82
      %p84 = scmp.ne.s32.totalorder %s73, %s74
      %p85 = scmp.eq.s32.totalorder %s13, 0
      %p86 = por %p84, %p85
      %p87 = scmp.ne.s32.totalorder %s73, %s74
      %p88 = scmp.eq.s32.totalorder %s14, 1
      %p89 = por %p87, %p88
      %p91 = scmp.ne.s32.totalorder %s74, %s90
      %p92 = scmp.eq.s32.totalorder %s14, 0
      %p93 = por %p91, %p92
      %p94 = scmp.le.s32.totalorder 1, %s8
      %p95 = scmp.lt.s32.totalorder %s8, 3
      %p96 = pnand %p94, %p95
      %p97 = pneg %p96
      // Predicated region
      $region9: #{fuse_video_attn.1} parent=5 // pred_check
        _
      $region10: #{fuse_video_attn.1} parent=5 // pred_check_branch
        %99 = sbr.rel (%p96) target = $region12
      $region11: #{fuse_video_attn.1} parent=5 // pred_region
        %s100 = ssub.s32 %s8, 1
      $region12: #{fuse_video_attn.1} parent=5 // pred_fallthru
        _
      %p101 = scmp.lt.s32.totalorder %s8, 2
      // Predicated region
      $region13: #{fuse_video_attn.1} parent=5 // pred_check
        %p102 = pneg %p101
      $region14: #{fuse_video_attn.1} parent=5 // pred_check_branch
        %104 = sbr.rel (%p102) target = $region16
      $region15: #{fuse_video_attn.1} parent=5 // pred_region
        // Predicated region
        $region17: #{fuse_video_attn.1} parent=15 // pred_check
          %p105 = pneg %p28
        $region18: #{fuse_video_attn.1} parent=15 // pred_check_branch
          %107 = sbr.rel (%p105) target = $region20
        $region19: #{fuse_video_attn.1} parent=15 // pred_region
          %s108 = sand.u32 %s18, 1
          %s109 = sand.u32 %s18, 1
          %s110 = smul.addr %s109, 128
          %s111 = scalar_lea.vmem [#allocation2], %s110
          %s112 = smul.u32 16, %s8
          %s113 = smul.addr %s112, 4
          %s114 = scalar_lea.vmem %s0, %s113
          // Predicated region
          $region21: #{fuse_video_attn.1} parent=19 // pred_check
            _
          $region22: #{fuse_video_attn.1} parent=19 // pred_check_branch
            %116 = sbr.rel (0) target = $region24
          $region23: #{fuse_video_attn.1} parent=19 // pred_region
            // Predicated region
            $region25: #{fuse_video_attn.1} parent=23 // pred_check
              _
            $region26: #{fuse_video_attn.1} parent=23 // pred_check_branch
              %118 = sbr.rel (0) target = $region28
            $region27: #{fuse_video_attn.1} parent=23 // pred_region
              loop: start=0, step=1, limit=1
              $region29: #{fuse_video_attn.1} parent=27 // loop_pre_header
                _
              $region30: #{fuse_video_attn.1} parent=27 // loop_header
                %s120 = sphi 0, %s124
                %p121 = scmp.ge.s32.totalorder %s120, 1
                %s125 = sphi %s114, %s114
                %s126 = sphi %s111, %s111
              $region31: #{fuse_video_attn.1} parent=27 // loop_header_branch
                %123 = sbr.rel (%p121) target = $region35
              $region32: #{fuse_video_attn.1} parent=27 // loop_body
                %v127 = vld [vmem:[%s125] sm:$0xff]
                %128 = vst [vmem:[%s126] sm:$0xff] %v127
                %v129 = vld [vmem:[%s125 + $0x8] sm:$0xff]
                %130 = vst [vmem:[%s126 + $0x8] sm:$0xff] %v129
                %v131 = vld [vmem:[%s125 + $0x10] sm:$0xff]
                %132 = vst [vmem:[%s126 + $0x10] sm:$0xff] %v131
                %v133 = vld [vmem:[%s125 + $0x18] sm:$0xff]
                %134 = vst [vmem:[%s126 + $0x18] sm:$0xff] %v133
                %v135 = vld [vmem:[%s125 + $0x20] sm:$0xff]
                %136 = vst [vmem:[%s126 + $0x20] sm:$0xff] %v135
                %v137 = vld [vmem:[%s125 + $0x28] sm:$0xff]
                %138 = vst [vmem:[%s126 + $0x28] sm:$0xff] %v137
                %v139 = vld [vmem:[%s125 + $0x30] sm:$0xff]
                %140 = vst [vmem:[%s126 + $0x30] sm:$0xff] %v139
                %v141 = vld [vmem:[%s125 + $0x38] sm:$0xff]
                %142 = vst [vmem:[%s126 + $0x38] sm:$0xff] %v141
                %v143 = vld [vmem:[%s125 + $0x80] sm:$0xff]
                %144 = vst [vmem:[%s126 + $0x40] sm:$0xff] %v143
                %v145 = vld [vmem:[%s125 + $0x88] sm:$0xff]
                %146 = vst [vmem:[%s126 + $0x48] sm:$0xff] %v145
                %v147 = vld [vmem:[%s125 + $0x90] sm:$0xff]
                %148 = vst [vmem:[%s126 + $0x50] sm:$0xff] %v147
                %v149 = vld [vmem:[%s125 + $0x98] sm:$0xff]
                %150 = vst [vmem:[%s126 + $0x58] sm:$0xff] %v149
                %v151 = vld [vmem:[%s125 + $0xa0] sm:$0xff]
                %152 = vst [vmem:[%s126 + $0x60] sm:$0xff] %v151
                %v153 = vld [vmem:[%s125 + $0xa8] sm:$0xff]
                %154 = vst [vmem:[%s126 + $0x68] sm:$0xff] %v153
                %v155 = vld [vmem:[%s125 + $0xb0] sm:$0xff]
                %156 = vst [vmem:[%s126 + $0x70] sm:$0xff] %v155
                %v157 = vld [vmem:[%s125 + $0xb8] sm:$0xff]
                %158 = vst [vmem:[%s126 + $0x78] sm:$0xff] %v157
              $region33: #{fuse_video_attn.1} parent=27 // loop_footer
                %s124 = sadd.s32 1, %s120
              $region34: #{fuse_video_attn.1} parent=27 // loop_footer_branch
                %119 = sbr.rel target = $region30
              $region35: #{fuse_video_attn.1} parent=27 // loop_exit
                _
            $region28: #{fuse_video_attn.1} parent=23 // pred_fallthru
              _
            // Predicated region
            $region36: #{fuse_video_attn.1} parent=23 // pred_check
              _
            $region37: #{fuse_video_attn.1} parent=23 // pred_check_branch
              %160 = sbr.rel target = $region39
            $region38: #{fuse_video_attn.1} parent=23 // pred_region
              _
            $region39: #{fuse_video_attn.1} parent=23 // pred_fallthru
              _
          $region24: #{fuse_video_attn.1} parent=19 // pred_fallthru
            _
          %161 = vnop
        $region20: #{fuse_video_attn.1} parent=15 // pred_fallthru
          _
        // Predicated region
        $region40: #{fuse_video_attn.1} parent=15 // pred_check
          %p162 = pneg %p54
        $region41: #{fuse_video_attn.1} parent=15 // pred_check_branch
          %164 = sbr.rel (%p162) target = $region43
        $region42: #{fuse_video_attn.1} parent=15 // pred_region
          %s165 = sand.u32 %s44, 1
          %s166 = sand.u32 %s44, 1
          %s167 = smul.addr %s166, 32
          %s168 = scalar_lea.vmem [#allocation3], %s167
          %s169 = smul.u32 16, %s8
          %s170 = scalar_lea.vmem %s1, %s169
          // Predicated region
          $region44: #{fuse_video_attn.1} parent=42 // pred_check
            _
          $region45: #{fuse_video_attn.1} parent=42 // pred_check_branch
            %172 = sbr.rel (0) target = $region47
          $region46: #{fuse_video_attn.1} parent=42 // pred_region
            // Predicated region
            $region48: #{fuse_video_attn.1} parent=46 // pred_check
              _
            $region49: #{fuse_video_attn.1} parent=46 // pred_check_branch
              %174 = sbr.rel (0) target = $region51
            $region50: #{fuse_video_attn.1} parent=46 // pred_region
              loop: start=0, step=1, limit=1
              $region52: #{fuse_video_attn.1} parent=50 // loop_pre_header
                _
              $region53: #{fuse_video_attn.1} parent=50 // loop_header
                %s176 = sphi 0, %s180
                %p177 = scmp.ge.s32.totalorder %s176, 1
                %s181 = sphi %s170, %s170
                %s182 = sphi %s168, %s168
              $region54: #{fuse_video_attn.1} parent=50 // loop_header_branch
                %179 = sbr.rel (%p177) target = $region58
              $region55: #{fuse_video_attn.1} parent=50 // loop_body
                %v183 = vld [vmem:[%s181] sm:$0xff]
                %184 = vst [vmem:[%s182] sm:$0xff] %v183
                %v185 = vld [vmem:[%s181 + $0x8] sm:$0xff]
                %186 = vst [vmem:[%s182 + $0x8] sm:$0xff] %v185
                %v187 = vld [vmem:[%s181 + $0x20] sm:$0xff]
                %188 = vst [vmem:[%s182 + $0x10] sm:$0xff] %v187
                %v189 = vld [vmem:[%s181 + $0x28] sm:$0xff]
                %190 = vst [vmem:[%s182 + $0x18] sm:$0xff] %v189
              $region56: #{fuse_video_attn.1} parent=50 // loop_footer
                %s180 = sadd.s32 1, %s176
              $region57: #{fuse_video_attn.1} parent=50 // loop_footer_branch
                %175 = sbr.rel target = $region53
              $region58: #{fuse_video_attn.1} parent=50 // loop_exit
                _
            $region51: #{fuse_video_attn.1} parent=46 // pred_fallthru
              _
            // Predicated region
            $region59: #{fuse_video_attn.1} parent=46 // pred_check
              _
            $region60: #{fuse_video_attn.1} parent=46 // pred_check_branch
              %192 = sbr.rel target = $region62
            $region61: #{fuse_video_attn.1} parent=46 // pred_region
              _
            $region62: #{fuse_video_attn.1} parent=46 // pred_fallthru
              _
          $region47: #{fuse_video_attn.1} parent=42 // pred_fallthru
            _
          %193 = vnop
        $region43: #{fuse_video_attn.1} parent=15 // pred_fallthru
          _
      $region16: #{fuse_video_attn.1} parent=5 // pred_fallthru
        _
      %p194 = scmp.le.s32.totalorder 1, %s8
      %p195 = scmp.lt.s32.totalorder %s8, 3
      %p196 = pnand %p194, %p195
      %p197 = pneg %p196
      // Predicated region
      $region63: #{fuse_video_attn.1} parent=5 // pred_check
        _
      $region64: #{fuse_video_attn.1} parent=5 // pred_check_branch
        %199 = sbr.rel (%p196) target = $region66
      $region65: #{fuse_video_attn.1} parent=5 // pred_region
        %s200 = ssub.s32 %s8, 1
        %s201 = sand.u32 %s21, 1
        %s202 = sand.u32 %s21, 1
        %s203 = smul.addr %s202, 128
        %s204 = scalar_lea.vmem [#allocation2], %s203
        // Predicated region
        $region67: #{fuse_video_attn.1} parent=65 // pred_check
          %p205 = pneg %p34
        $region68: #{fuse_video_attn.1} parent=65 // pred_check_branch
          %207 = sbr.rel (%p205) target = $region70
        $region69: #{fuse_video_attn.1} parent=65 // pred_region
          _
        $region70: #{fuse_video_attn.1} parent=65 // pred_fallthru
          _
        %s208 = sand.u32 %s47, 1
        %s209 = sand.u32 %s47, 1
        %s210 = smul.addr %s209, 32
        %s211 = scalar_lea.vmem [#allocation3], %s210
        // Predicated region
        $region71: #{fuse_video_attn.1} parent=65 // pred_check
          %p212 = pneg %p60
        $region72: #{fuse_video_attn.1} parent=65 // pred_check_branch
          %214 = sbr.rel (%p212) target = $region74
        $region73: #{fuse_video_attn.1} parent=65 // pred_region
          _
        $region74: #{fuse_video_attn.1} parent=65 // pred_fallthru
          _
        %s215 = sand.u32 %s21, 1
        %s216 = sand.u32 %s21, 1
        %s217 = smul.addr %s216, 128
        %s218 = scalar_lea.vmem [#allocation2], %s217
        %p219 = pneg %p34
        %p220 = pneg %p31
        %s221 = sand.u32 %s47, 1
        %s222 = sand.u32 %s47, 1
        %s223 = smul.addr %s222, 32
        %s224 = scalar_lea.vmem [#allocation3], %s223
        %p225 = pneg %p60
        %p226 = pneg %p57
        %p227 = pneg %p86
        %p228 = pneg %p83
        %s229 = sand.u32 %s73, 1
        %s230 = sand.u32 %s73, 1
        %s231 = smul.addr %s230, 64
        %s232 = scalar_lea.vmem [#allocation4], %s231
        %s233 = smul.u32 16, %s13
        %s234 = smul.u32 16, %s13
        %s235 = smul.u32 16, %s13
        %v236 = vld [vmem:[%s204] sm:$0x77]
        %v237 = vld [vmem:[%s204 + $0x8] sm:$0x77]
        %v238 = vld [vmem:[%s204 + $0x10] sm:$0x77]
        %v239 = vld [vmem:[%s204 + $0x18] sm:$0x77]
        %v240 = vld [vmem:[%s204 + $0x20] sm:$0x77]
        %v241 = vld [vmem:[%s204 + $0x28] sm:$0x77]
        %v242 = vld [vmem:[%s204 + $0x30] sm:$0x77]
        %v243 = vld [vmem:[%s204 + $0x38] sm:$0x77]
        %v244 = vld [vmem:[%s204 + $0x40] sm:$0x77]
        %v245 = vld [vmem:[%s204 + $0x48] sm:$0x77]
        %v246 = vld [vmem:[%s204 + $0x50] sm:$0x77]
        %v247 = vld [vmem:[%s204 + $0x58] sm:$0x77]
        %v248 = vld [vmem:[%s204 + $0x60] sm:$0x77]
        %v249 = vld [vmem:[%s204 + $0x68] sm:$0x77]
        %v250 = vld [vmem:[%s204 + $0x70] sm:$0x77]
        %v251 = vld [vmem:[%s204 + $0x78] sm:$0x77]
        %v252 = vld [vmem:[%s211] sm:$0xff]
        %v253 = vld [vmem:[%s211 + $0x8] sm:$0xff]
        %v254 = vld [vmem:[%s211 + $0x10] sm:$0xff]
        %v255 = vld [vmem:[%s211 + $0x18] sm:$0xff]
        %v260 = vlaneseq
        %v261 = vshrl.u32 %v260, 7
        %v262 = vsub.s32 0, %v261
        %v263 = vrot.slane %v252, %v262
        %v264 = vlaneseq
        %v265 = vshrl.u32 %v264, 7
        %v266 = vsub.s32 1, %v265
        %v267 = vrot.slane %v252, %v266
        %v268 = vlaneseq
        %v269 = vshrl.u32 %v268, 7
        %v270 = vsub.s32 2, %v269
        %v271 = vrot.slane %v252, %v270
        %v272 = vlaneseq
        %v273 = vshrl.u32 %v272, 7
        %v274 = vsub.s32 3, %v273
        %v275 = vrot.slane %v252, %v274
        %v276 = vlaneseq
        %v277 = vshrl.u32 %v276, 7
        %v278 = vsub.s32 4, %v277
        %v279 = vrot.slane %v252, %v278
        %v280 = vlaneseq
        %v281 = vshrl.u32 %v280, 7
        %v282 = vsub.s32 5, %v281
        %v283 = vrot.slane %v252, %v282
        %v284 = vlaneseq
        %v285 = vshrl.u32 %v284, 7
        %v286 = vsub.s32 6, %v285
        %v287 = vrot.slane %v252, %v286
        %v288 = vlaneseq
        %v289 = vshrl.u32 %v288, 7
        %v290 = vsub.s32 7, %v289
        %v291 = vrot.slane %v252, %v290
        %v292 = vlaneseq
        %v293 = vshrl.u32 %v292, 7
        %v294 = vsub.s32 0, %v293
        %v295 = vrot.slane %v253, %v294
        %v296 = vlaneseq
        %v297 = vshrl.u32 %v296, 7
        %v298 = vsub.s32 1, %v297
        %v299 = vrot.slane %v253, %v298
        %v300 = vlaneseq
        %v301 = vshrl.u32 %v300, 7
        %v302 = vsub.s32 2, %v301
        %v303 = vrot.slane %v253, %v302
        %v304 = vlaneseq
        %v305 = vshrl.u32 %v304, 7
        %v306 = vsub.s32 3, %v305
        %v307 = vrot.slane %v253, %v306
        %v308 = vlaneseq
        %v309 = vshrl.u32 %v308, 7
        %v310 = vsub.s32 4, %v309
        %v311 = vrot.slane %v253, %v310
        %v312 = vlaneseq
        %v313 = vshrl.u32 %v312, 7
        %v314 = vsub.s32 5, %v313
        %v315 = vrot.slane %v253, %v314
        %v316 = vlaneseq
        %v317 = vshrl.u32 %v316, 7
        %v318 = vsub.s32 6, %v317
        %v319 = vrot.slane %v253, %v318
        %v320 = vlaneseq
        %v321 = vshrl.u32 %v320, 7
        %v322 = vsub.s32 7, %v321
        %v323 = vrot.slane %v253, %v322
        %v324 = vlaneseq
        %v325 = vshrl.u32 %v324, 7
        %v326 = vsub.s32 0, %v325
        %v327 = vrot.slane %v254, %v326
        %v328 = vlaneseq
        %v329 = vshrl.u32 %v328, 7
        %v330 = vsub.s32 1, %v329
        %v331 = vrot.slane %v254, %v330
        %v332 = vlaneseq
        %v333 = vshrl.u32 %v332, 7
        %v334 = vsub.s32 2, %v333
        %v335 = vrot.slane %v254, %v334
        %v336 = vlaneseq
        %v337 = vshrl.u32 %v336, 7
        %v338 = vsub.s32 3, %v337
        %v339 = vrot.slane %v254, %v338
        %v340 = vlaneseq
        %v341 = vshrl.u32 %v340, 7
        %v342 = vsub.s32 4, %v341
        %v343 = vrot.slane %v254, %v342
        %v344 = vlaneseq
        %v345 = vshrl.u32 %v344, 7
        %v346 = vsub.s32 5, %v345
        %v347 = vrot.slane %v254, %v346
        %v348 = vlaneseq
        %v349 = vshrl.u32 %v348, 7
        %v350 = vsub.s32 6, %v349
        %v351 = vrot.slane %v254, %v350
        %v352 = vlaneseq
        %v353 = vshrl.u32 %v352, 7
        %v354 = vsub.s32 7, %v353
        %v355 = vrot.slane %v254, %v354
        %v356 = vlaneseq
        %v357 = vshrl.u32 %v356, 7
        %v358 = vsub.s32 0, %v357
        %v359 = vrot.slane %v255, %v358
        %v360 = vlaneseq
        %v361 = vshrl.u32 %v360, 7
        %v362 = vsub.s32 1, %v361
        %v363 = vrot.slane %v255, %v362
        %v364 = vlaneseq
        %v365 = vshrl.u32 %v364, 7
        %v366 = vsub.s32 2, %v365
        %v367 = vrot.slane %v255, %v366
        %v368 = vlaneseq
        %v369 = vshrl.u32 %v368, 7
        %v370 = vsub.s32 3, %v369
        %v371 = vrot.slane %v255, %v370
        %v372 = vlaneseq
        %v373 = vshrl.u32 %v372, 7
        %v374 = vsub.s32 4, %v373
        %v375 = vrot.slane %v255, %v374
        %v376 = vlaneseq
        %v377 = vshrl.u32 %v376, 7
        %v378 = vsub.s32 5, %v377
        %v379 = vrot.slane %v255, %v378
        %v380 = vlaneseq
        %v381 = vshrl.u32 %v380, 7
        %v382 = vsub.s32 6, %v381
        %v383 = vrot.slane %v255, %v382
        %v384 = vlaneseq
        %v385 = vshrl.u32 %v384, 7
        %v386 = vsub.s32 7, %v385
        %v387 = vrot.slane %v255, %v386
        %v388 = vcombine.low %v263, %v267
        %v389 = vcombine.low %v271, %v275
        %v390 = vcombine.low %v279, %v283
        %v391 = vcombine.low %v287, %v291
        %v392 = vcombine.low %v295, %v299
        %v393 = vcombine.low %v303, %v307
        %v394 = vcombine.low %v311, %v315
        %v395 = vcombine.low %v319, %v323
        %v396 = vcombine.low %v327, %v331
        %v397 = vcombine.low %v335, %v339
        %v398 = vcombine.low %v343, %v347
        %v399 = vcombine.low %v351, %v355
        %v400 = vcombine.low %v359, %v363
        %v401 = vcombine.low %v367, %v371
        %v402 = vcombine.low %v375, %v379
        %v403 = vcombine.low %v383, %v387
        %v420 = vadd.f32 %v236, %v388
        %v421 = vadd.f32 %v237, %v389
        %v422 = vadd.f32 %v238, %v390
        %v423 = vadd.f32 %v239, %v391
        %v424 = vadd.f32 %v240, %v392
        %v425 = vadd.f32 %v241, %v393
        %v426 = vadd.f32 %v242, %v394
        %v427 = vadd.f32 %v243, %v395
        %v428 = vadd.f32 %v244, %v396
        %v429 = vadd.f32 %v245, %v397
        %v430 = vadd.f32 %v246, %v398
        %v431 = vadd.f32 %v247, %v399
        %v432 = vadd.f32 %v248, %v400
        %v433 = vadd.f32 %v249, %v401
        %v434 = vadd.f32 %v250, %v402
        %v435 = vadd.f32 %v251, %v403
        %v452 = vcombine.high %v420, %v420
        %v453 = vcombine.high %v421, %v421
        %v454 = vcombine.high %v422, %v422
        %v455 = vcombine.high %v423, %v423
        %v456 = vcombine.high %v424, %v424
        %v457 = vcombine.high %v425, %v425
        %v458 = vcombine.high %v426, %v426
        %v459 = vcombine.high %v427, %v427
        %v460 = vcombine.high %v428, %v428
        %v461 = vcombine.high %v429, %v429
        %v462 = vcombine.high %v430, %v430
        %v463 = vcombine.high %v431, %v431
        %v464 = vcombine.high %v432, %v432
        %v465 = vcombine.high %v433, %v433
        %v466 = vcombine.high %v434, %v434
        %v467 = vcombine.high %v435, %v435
        %v484 = vpack.c.bf16 %v420, %v420
        %v485 = vpack.c.bf16 %v452, %v452
        %v486 = vpack.c.bf16 %v421, %v421
        %v487 = vpack.c.bf16 %v453, %v453
        %v488 = vpack.c.bf16 %v422, %v422
        %v489 = vpack.c.bf16 %v454, %v454
        %v490 = vpack.c.bf16 %v423, %v423
        %v491 = vpack.c.bf16 %v455, %v455
        %v492 = vpack.c.bf16 %v424, %v424
        %v493 = vpack.c.bf16 %v456, %v456
        %v494 = vpack.c.bf16 %v425, %v425
        %v495 = vpack.c.bf16 %v457, %v457
        %v496 = vpack.c.bf16 %v426, %v426
        %v497 = vpack.c.bf16 %v458, %v458
        %v498 = vpack.c.bf16 %v427, %v427
        %v499 = vpack.c.bf16 %v459, %v459
        %v500 = vpack.c.bf16 %v428, %v428
        %v501 = vpack.c.bf16 %v460, %v460
        %v502 = vpack.c.bf16 %v429, %v429
        %v503 = vpack.c.bf16 %v461, %v461
        %v504 = vpack.c.bf16 %v430, %v430
        %v505 = vpack.c.bf16 %v462, %v462
        %v506 = vpack.c.bf16 %v431, %v431
        %v507 = vpack.c.bf16 %v463, %v463
        %v508 = vpack.c.bf16 %v432, %v432
        %v509 = vpack.c.bf16 %v464, %v464
        %v510 = vpack.c.bf16 %v433, %v433
        %v511 = vpack.c.bf16 %v465, %v465
        %v512 = vpack.c.bf16 %v434, %v434
        %v513 = vpack.c.bf16 %v466, %v466
        %v514 = vpack.c.bf16 %v435, %v435
        %v515 = vpack.c.bf16 %v467, %v467
        %v548 = vcombine.low %v484, %v485
        %v549 = vcombine.low %v486, %v487
        %v551 = vunpack.c.l.s4 1983009808
        %v552 = vunpack.c.0.s8 %v551
        %v553 = vlaneseq
        %v554 = vshrl.u32 %v553, 7
        %v555 = vsub.s32 %v552, %v554
        %v556 = vrot.slane %v548, %v555
        %v558 = vunpack.c.l.s4 1983009808
        %v559 = vunpack.c.0.s8 %v558
        %v560 = vlaneseq
        %v561 = vshrl.u32 %v560, 7
        %v562 = vsub.s32 %v559, %v561
        %v563 = vrot.slane %v549, %v562
        %v564 = vcombine.low %v556, %v563
        %v565 = vcombine.low %v488, %v489
        %v566 = vcombine.low %v490, %v491
        %v568 = vunpack.c.l.s4 1983009808
        %v569 = vunpack.c.0.s8 %v568
        %v570 = vlaneseq
        %v571 = vshrl.u32 %v570, 7
        %v572 = vsub.s32 %v569, %v571
        %v573 = vrot.slane %v565, %v572
        %v575 = vunpack.c.l.s4 1983009808
        %v576 = vunpack.c.0.s8 %v575
        %v577 = vlaneseq
        %v578 = vshrl.u32 %v577, 7
        %v579 = vsub.s32 %v576, %v578
        %v580 = vrot.slane %v566, %v579
        %v581 = vcombine.low %v573, %v580
        %v582 = vcombine.low %v492, %v493
        %v583 = vcombine.low %v494, %v495
        %v585 = vunpack.c.l.s4 1983009808
        %v586 = vunpack.c.0.s8 %v585
        %v587 = vlaneseq
        %v588 = vshrl.u32 %v587, 7
        %v589 = vsub.s32 %v586, %v588
        %v590 = vrot.slane %v582, %v589
        %v592 = vunpack.c.l.s4 1983009808
        %v593 = vunpack.c.0.s8 %v592
        %v594 = vlaneseq
        %v595 = vshrl.u32 %v594, 7
        %v596 = vsub.s32 %v593, %v595
        %v597 = vrot.slane %v583, %v596
        %v598 = vcombine.low %v590, %v597
        %v599 = vcombine.low %v496, %v497
        %v600 = vcombine.low %v498, %v499
        %v602 = vunpack.c.l.s4 1983009808
        %v603 = vunpack.c.0.s8 %v602
        %v604 = vlaneseq
        %v605 = vshrl.u32 %v604, 7
        %v606 = vsub.s32 %v603, %v605
        %v607 = vrot.slane %v599, %v606
        %v609 = vunpack.c.l.s4 1983009808
        %v610 = vunpack.c.0.s8 %v609
        %v611 = vlaneseq
        %v612 = vshrl.u32 %v611, 7
        %v613 = vsub.s32 %v610, %v612
        %v614 = vrot.slane %v600, %v613
        %v615 = vcombine.low %v607, %v614
        %v616 = vcombine.low %v500, %v501
        %v617 = vcombine.low %v502, %v503
        %v619 = vunpack.c.l.s4 1983009808
        %v620 = vunpack.c.0.s8 %v619
        %v621 = vlaneseq
        %v622 = vshrl.u32 %v621, 7
        %v623 = vsub.s32 %v620, %v622
        %v624 = vrot.slane %v616, %v623
        %v626 = vunpack.c.l.s4 1983009808
        %v627 = vunpack.c.0.s8 %v626
        %v628 = vlaneseq
        %v629 = vshrl.u32 %v628, 7
        %v630 = vsub.s32 %v627, %v629
        %v631 = vrot.slane %v617, %v630
        %v632 = vcombine.low %v624, %v631
        %v633 = vcombine.low %v504, %v505
        %v634 = vcombine.low %v506, %v507
        %v636 = vunpack.c.l.s4 1983009808
        %v637 = vunpack.c.0.s8 %v636
        %v638 = vlaneseq
        %v639 = vshrl.u32 %v638, 7
        %v640 = vsub.s32 %v637, %v639
        %v641 = vrot.slane %v633, %v640
        %v643 = vunpack.c.l.s4 1983009808
        %v644 = vunpack.c.0.s8 %v643
        %v645 = vlaneseq
        %v646 = vshrl.u32 %v645, 7
        %v647 = vsub.s32 %v644, %v646
        %v648 = vrot.slane %v634, %v647
        %v649 = vcombine.low %v641, %v648
        %v650 = vcombine.low %v508, %v509
        %v651 = vcombine.low %v510, %v511
        %v653 = vunpack.c.l.s4 1983009808
        %v654 = vunpack.c.0.s8 %v653
        %v655 = vlaneseq
        %v656 = vshrl.u32 %v655, 7
        %v657 = vsub.s32 %v654, %v656
        %v658 = vrot.slane %v650, %v657
        %v660 = vunpack.c.l.s4 1983009808
        %v661 = vunpack.c.0.s8 %v660
        %v662 = vlaneseq
        %v663 = vshrl.u32 %v662, 7
        %v664 = vsub.s32 %v661, %v663
        %v665 = vrot.slane %v651, %v664
        %v666 = vcombine.low %v658, %v665
        %v667 = vcombine.low %v512, %v513
        %v668 = vcombine.low %v514, %v515
        %v670 = vunpack.c.l.s4 1983009808
        %v671 = vunpack.c.0.s8 %v670
        %v672 = vlaneseq
        %v673 = vshrl.u32 %v672, 7
        %v674 = vsub.s32 %v671, %v673
        %v675 = vrot.slane %v667, %v674
        %v677 = vunpack.c.l.s4 1983009808
        %v678 = vunpack.c.0.s8 %v677
        %v679 = vlaneseq
        %v680 = vshrl.u32 %v679, 7
        %v681 = vsub.s32 %v678, %v680
        %v682 = vrot.slane %v668, %v681
        %v683 = vcombine.low %v675, %v682
        %vm692 = vcmask 1041408
        %vm693 = vsmask.f32 1280
        %vm694 = vmand %vm692, %vm693
        %vm695 = vcmask 1043458
        %vm696 = vsmask.f32 3328
        %vm697 = vmand %vm695, %vm696
        %vm698 = vmor %vm697, %vm694
        %vm699 = vcmask 1045508
        %vm700 = vsmask.f32 5376
        %vm701 = vmand %vm699, %vm700
        %vm702 = vmor %vm701, %vm698
        %vm703 = vcmask 1047558
        %vm704 = vsmask.f32 7424
        %vm705 = vmand %vm703, %vm704
        %vm706 = vmor %vm705, %vm702
        %v707 = vld [vmem:[%s232] sm:$0xff]
        %v708 = vsel %vm706, %v564, %v707
        %709 = vst [vmem:[%s232] sm:$0xff] %v708
        %v710 = vld [vmem:[%s232 + $0x8] sm:$0xff]
        %v711 = vsel %vm706, %v581, %v710
        %712 = vst [vmem:[%s232 + $0x8] sm:$0xff] %v711
        %v713 = vld [vmem:[%s232 + $0x10] sm:$0xff]
        %v714 = vsel %vm706, %v598, %v713
        %715 = vst [vmem:[%s232 + $0x10] sm:$0xff] %v714
        %v716 = vld [vmem:[%s232 + $0x18] sm:$0xff]
        %v717 = vsel %vm706, %v615, %v716
        %718 = vst [vmem:[%s232 + $0x18] sm:$0xff] %v717
        %v719 = vld [vmem:[%s232 + $0x20] sm:$0xff]
        %v720 = vsel %vm706, %v632, %v719
        %721 = vst [vmem:[%s232 + $0x20] sm:$0xff] %v720
        %v722 = vld [vmem:[%s232 + $0x28] sm:$0xff]
        %v723 = vsel %vm706, %v649, %v722
        %724 = vst [vmem:[%s232 + $0x28] sm:$0xff] %v723
        %v725 = vld [vmem:[%s232 + $0x30] sm:$0xff]
        %v726 = vsel %vm706, %v666, %v725
        %727 = vst [vmem:[%s232 + $0x30] sm:$0xff] %v726
        %v728 = vld [vmem:[%s232 + $0x38] sm:$0xff]
        %v729 = vsel %vm706, %v683, %v728
        %730 = vst [vmem:[%s232 + $0x38] sm:$0xff] %v729
        %s731 = sand.u32 %s73, 1
        %s732 = sand.u32 %s73, 1
        %s733 = smul.addr %s732, 64
        %s734 = scalar_lea.vmem [#allocation4], %s733
        // Predicated region
        $region75: #{fuse_video_attn.1} parent=65 // pred_check
          %p735 = pneg %p83
        $region76: #{fuse_video_attn.1} parent=65 // pred_check_branch
          %737 = sbr.rel (%p735) target = $region78
        $region77: #{fuse_video_attn.1} parent=65 // pred_region
          %s738 = smul.u32 16, %s13
          %s739 = smul.addr %s738, 2
          %s740 = scalar_lea.vmem %s2, %s739
          // Predicated region
          $region79: #{fuse_video_attn.1} parent=77 // pred_check
            _
          $region80: #{fuse_video_attn.1} parent=77 // pred_check_branch
            %742 = sbr.rel (0) target = $region82
          $region81: #{fuse_video_attn.1} parent=77 // pred_region
            // Predicated region
            $region83: #{fuse_video_attn.1} parent=81 // pred_check
              _
            $region84: #{fuse_video_attn.1} parent=81 // pred_check_branch
              %744 = sbr.rel (0) target = $region86
            $region85: #{fuse_video_attn.1} parent=81 // pred_region
              loop: start=0, step=1, limit=1
              $region87: #{fuse_video_attn.1} parent=85 // loop_pre_header
                _
              $region88: #{fuse_video_attn.1} parent=85 // loop_header
                %s746 = sphi 0, %s750
                %p747 = scmp.ge.s32.totalorder %s746, 1
                %s751 = sphi %s734, %s734
                %s752 = sphi %s740, %s740
              $region89: #{fuse_video_attn.1} parent=85 // loop_header_branch
                %749 = sbr.rel (%p747) target = $region93
              $region90: #{fuse_video_attn.1} parent=85 // loop_body
                %v753 = vld [vmem:[%s751] sm:$0xff]
                %754 = vst [vmem:[%s752] sm:$0xff] %v753
                %v755 = vld [vmem:[%s751 + $0x8] sm:$0xff]
                %756 = vst [vmem:[%s752 + $0x8] sm:$0xff] %v755
                %v757 = vld [vmem:[%s751 + $0x10] sm:$0xff]
                %758 = vst [vmem:[%s752 + $0x10] sm:$0xff] %v757
                %v759 = vld [vmem:[%s751 + $0x18] sm:$0xff]
                %760 = vst [vmem:[%s752 + $0x18] sm:$0xff] %v759
                %v761 = vld [vmem:[%s751 + $0x20] sm:$0xff]
                %762 = vst [vmem:[%s752 + $0x40] sm:$0xff] %v761
                %v763 = vld [vmem:[%s751 + $0x28] sm:$0xff]
                %764 = vst [vmem:[%s752 + $0x48] sm:$0xff] %v763
                %v765 = vld [vmem:[%s751 + $0x30] sm:$0xff]
                %766 = vst [vmem:[%s752 + $0x50] sm:$0xff] %v765
                %v767 = vld [vmem:[%s751 + $0x38] sm:$0xff]
                %768 = vst [vmem:[%s752 + $0x58] sm:$0xff] %v767
              $region91: #{fuse_video_attn.1} parent=85 // loop_footer
                %s750 = sadd.s32 1, %s746
              $region92: #{fuse_video_attn.1} parent=85 // loop_footer_branch
                %745 = sbr.rel target = $region88
              $region93: #{fuse_video_attn.1} parent=85 // loop_exit
                _
            $region86: #{fuse_video_attn.1} parent=81 // pred_fallthru
              _
            // Predicated region
            $region94: #{fuse_video_attn.1} parent=81 // pred_check
              _
            $region95: #{fuse_video_attn.1} parent=81 // pred_check_branch
              %770 = sbr.rel target = $region97
            $region96: #{fuse_video_attn.1} parent=81 // pred_region
              _
            $region97: #{fuse_video_attn.1} parent=81 // pred_fallthru
              _
          $region82: #{fuse_video_attn.1} parent=77 // pred_fallthru
            _
          %771 = vnop
        $region78: #{fuse_video_attn.1} parent=65 // pred_fallthru
          _
      $region66: #{fuse_video_attn.1} parent=5 // pred_fallthru
        _
      %p772 = scmp.le.s32.totalorder 2, %s8
      // Predicated region
      $region98: #{fuse_video_attn.1} parent=5 // pred_check
        %p773 = pneg %p772
      $region99: #{fuse_video_attn.1} parent=5 // pred_check_branch
        %775 = sbr.rel (%p773) target = $region101
      $region100: #{fuse_video_attn.1} parent=5 // pred_region
        %s776 = ssub.s32 %s8, 2
        // Predicated region
        $region102: #{fuse_video_attn.1} parent=100 // pred_check
          %p777 = pneg %p89
        $region103: #{fuse_video_attn.1} parent=100 // pred_check_branch
          %779 = sbr.rel (%p777) target = $region105
        $region104: #{fuse_video_attn.1} parent=100 // pred_region
          %s780 = sand.u32 %s74, 1
          %s781 = sand.u32 %s74, 1
          %s782 = smul.addr %s781, 64
          %s783 = scalar_lea.vmem [#allocation4], %s782
        $region105: #{fuse_video_attn.1} parent=100 // pred_fallthru
          _
      $region101: #{fuse_video_attn.1} parent=5 // pred_fallthru
        _
    $region6: #{fuse_video_attn.1} parent=1 // loop_footer
      %s12 = sadd.s32 1, %s8
    $region7: #{fuse_video_attn.1} parent=1 // loop_footer_branch
      %7 = sbr.rel target = $region3
    $region8: #{fuse_video_attn.1} parent=1 // loop_exit
      _

</llo_original>
